<compile_context>
chip_gen: v6e
topology: v6e:2x2x1
jax: 0.10.0
libtpu: 0.0.40
codegen_flags: <defaults>
</compile_context>

<pallas_src>
import functools

import jax
import jax.numpy as jnp
from jax.experimental import pallas as pl
from jax.experimental.pallas import tpu as pltpu


# ---------------------------------------------------------------------------
# Pallas kernel: out_tile = weight @ x_tile  (channel mix, spatial lane-dense)
# ---------------------------------------------------------------------------
def _conv1x1_kernel(w_ref, x_ref, o_ref):
    # w_ref: (C, C)   conv weight, weight[o, c] — stationary across the grid
    # x_ref: (C, tn)  one batch item's spatial tile, channels on sublanes
    # o_ref: (C, tn)
    o_ref[...] = jnp.dot(
        w_ref[...], x_ref[...], preferred_element_type=jnp.float32
    ).astype(o_ref.dtype)


def _pick_spatial_tile(C, HW, max_tile):
    """Choose a lane-dense spatial tile that fits the per-step VMEM budget."""
    if HW < 128:
        # Tiny spatial extent: block dim equal to the full array dim is the
        # only layout Mosaic accepts when it is not a multiple of 128.
        return HW
    # ~8 MiB for (x + out) tiles, double-buffered, f32  -> fits v5e's 16 MiB
    # default scoped VMEM and leaves headroom on v6e (32/128) and v7x (32/64).
    budget_bytes = 8 << 20
    bytes_per_col = 4 * 4 * max(C, 1)     # (x + out) * double-buffer * f32
    tn = budget_bytes // bytes_per_col
    tn = max(128, min(tn, max_tile, HW))
    tn = (tn // 128) * 128                # keep lane dim a multiple of 128
    return tn


def _conv1x1_pallas(x3, weight, *, tn):
    """x3: (B, C, HW) f32, weight: (C, C) f32 -> (B, C, HW) f32."""
    B, C, HW = x3.shape
    grid = (B, pl.cdiv(HW, tn))
    return pl.pallas_call(
        _conv1x1_kernel,
        out_shape=jax.ShapeDtypeStruct((B, C, HW), x3.dtype),
        grid_spec=pltpu.PrefetchScalarGridSpec(
            num_scalar_prefetch=0,
            grid=grid,
            in_specs=[
                # weight: full C x C, same block every step -> resident in VMEM
                pl.BlockSpec((C, C), lambda b, j: (0, 0)),
                # x: one batch item, full channel extent, lane-dense spatial tile
                pl.BlockSpec((None, C, tn), lambda b, j: (b, 0, j)),
            ],
            out_specs=pl.BlockSpec((None, C, tn), lambda b, j: (b, 0, j)),
        ),
        compiler_params=pltpu.CompilerParams(
            dimension_semantics=("parallel", "parallel"),
        ),
    )(weight, x3)


# ---------------------------------------------------------------------------
# Parameter setup (deterministic, mirrors the PyTorch __init__ LU construction)
# ---------------------------------------------------------------------------
def init_params(in_channel, key):
    a = jax.random.normal(key, (in_channel, in_channel), dtype=jnp.float32)
    q, _ = jnp.linalg.qr(a)                       # random orthogonal matrix
    w_p, w_l, w_u_full = jax.scipy.linalg.lu(q)   # P, unit-lower L, upper U
    w_s = jnp.diag(w_u_full)
    w_u = jnp.triu(w_u_full, 1)
    u_mask = jnp.triu(jnp.ones((in_channel, in_channel), jnp.float32), 1)
    l_mask = u_mask.T
    s_sign = jnp.sign(w_s)
    l_eye = jnp.eye(in_channel, dtype=jnp.float32)
    w_s_log = jnp.log(jnp.abs(w_s))               # learnable log|s|
    return dict(
        w_p=w_p.astype(jnp.float32),
        w_l=w_l.astype(jnp.float32),
        w_u=w_u.astype(jnp.float32),
        w_s=w_s_log.astype(jnp.float32),
        s_sign=s_sign.astype(jnp.float32),
        u_mask=u_mask,
        l_mask=l_mask,
        l_eye=l_eye,
    )


def calc_weight(params):
    # weight = P @ (L*l_mask + I) @ (U*u_mask + diag(sign(s) * exp(log|s|)))
    lower = params["w_l"] * params["l_mask"] + params["l_eye"]
    upper = params["w_u"] * params["u_mask"] + jnp.diag(
        params["s_sign"] * jnp.exp(params["w_s"])
    )
    return params["w_p"] @ lower @ upper


# ---------------------------------------------------------------------------
# Forward pass (matches InvConv1x1LU.forward: returns (out, logdet))
# ---------------------------------------------------------------------------
@functools.partial(jax.jit, static_argnames=("max_tile",))
def inv_conv1x1_lu_forward(x, params, *, max_tile=8192):
    # x: NCHW float32
    B, C, H, W = x.shape
    weight = calc_weight(params)                  # (C, C) — tiny, glue in JAX

    HW = H * W
    x3 = x.reshape(B, C, HW)                      # free reshape, stays NCHW-major
    tn = _pick_spatial_tile(C, HW, max_tile)      # static (shape-derived)
    out3 = _conv1x1_pallas(x3, weight, tn=tn)
    out = out3.reshape(B, C, H, W)

    logdet = H * W * jnp.sum(params["w_s"])       # scalar; trivial reduction in JAX
    return out, logdet


# TODO(synk): 'conditional' mode (WCondNet) and reverse() (CxC matrix inverse)
#             are not implemented here; only the unconditional forward pass is.

if __name__ == "__main__":
    key = jax.random.PRNGKey(0)
    k_param, k_inp = jax.random.split(key)

    B, C, H, W = 2, 4, 16, 16
    params = init_params(C, k_param)
    x = jax.random.normal(k_inp, (B, C, H, W), dtype=jnp.float32)

    out, logdet = inv_conv1x1_lu_forward(x, params)
    out = jax.block_until_ready(out)
    logdet = jax.block_until_ready(logdet)

    # Reference check (plain JAX einsum = F.conv2d with a 1x1 kernel)
    weight = calc_weight(params)
    ref_out = jnp.einsum("oc,bchw->bohw", weight, x)
    ref_logdet = H * W * jnp.sum(params["w_s"])
    assert out.shape == (B, C, H, W)
    assert jnp.allclose(out, ref_out, atol=1e-5, rtol=1e-5)
    assert jnp.allclose(logdet, ref_logdet, atol=1e-5, rtol=1e-5)

    print("KERNEL_OK")
</pallas_src>

<mosaic_0001>
module attributes {stable_mosaic.version = 11 : i64} {
  func.func @_conv1x1_kernel(%arg0: i32, %arg1: i32, %arg2: memref<4x4xf32, #tpu.memory_space<vmem>>, %arg3: memref<1x4x256xf32, #tpu.memory_space<vmem>>, %arg4: memref<1x4x256xf32, #tpu.memory_space<vmem>>) attributes {dimension_semantics = [#tpu.dimension_semantics<parallel>, #tpu.dimension_semantics<parallel>], iteration_bounds = array<i64: 2, 1>, scalar_prefetch = 0 : i64, scratch_operands = 0 : i64, tpu.core_type = #tpu.core_type<tc>, window_params = [{pipeline_mode = #tpu.pipeline_mode<synchronous>, transform_indices = @transform_0, window_bounds = array<i64: 4, 4>}, {transform_indices = @transform_1, window_bounds = array<i64: 1, 4, 256>}, {transform_indices = @transform_2, window_bounds = array<i64: 1, 4, 256>}]} {
    %c0 = arith.constant 0 : index
    %c0_0 = arith.constant 0 : index
    %0 = vector.load %arg2[%c0, %c0_0] : memref<4x4xf32, #tpu.memory_space<vmem>>, vector<4x4xf32>
    %c0_1 = arith.constant 0 : index
    %c0_2 = arith.constant 0 : index
    %c0_3 = arith.constant 0 : index
    %1 = vector.load %arg3[%c0_1, %c0_2, %c0_3] : memref<1x4x256xf32, #tpu.memory_space<vmem>>, vector<1x4x256xf32>
    %2 = vector.shape_cast %1 : vector<1x4x256xf32> to vector<4x256xf32>
    %cst = arith.constant dense<0.000000e+00> : vector<4x256xf32>
    %3 = tpu.matmul %0, %2, %cst {dimension_numbers = #tpu.dot_dimension_numbers<[1], [0], [0], [1], [0, 0, 1, 1], [], []>} : vector<4x4xf32>, vector<4x256xf32>, vector<4x256xf32> -> vector<4x256xf32>
    %c0_4 = arith.constant 0 : index
    %c0_5 = arith.constant 0 : index
    %c0_6 = arith.constant 0 : index
    %4 = vector.load %arg4[%c0_4, %c0_5, %c0_6] : memref<1x4x256xf32, #tpu.memory_space<vmem>>, vector<1x4x256xf32>
    %5 = vector.shape_cast %4 : vector<1x4x256xf32> to vector<4x256xf32>
    %6 = vector.shape_cast %3 : vector<4x256xf32> to vector<1x4x256xf32>
    tpu.vector_store %arg4[%c0_4, %c0_5, %c0_6], %6 {strides = array<i32>} : memref<1x4x256xf32, #tpu.memory_space<vmem>>, vector<1x4x256xf32>,
    return
  }
  func.func @transform_0(%arg0: i32, %arg1: i32) -> (i32, i32) {
    %c0_i32 = arith.constant 0 : i32
    %c0_i32_0 = arith.constant 0 : i32
    %c0_i32_1 = arith.constant 0 : i32
    return %c0_i32, %c0_i32_0 : i32, i32
  }
  func.func @transform_1(%arg0: i32, %arg1: i32) -> (i32, i32, i32) {
    %c0_i32 = arith.constant 0 : i32
    %c0_i32_0 = arith.constant 0 : i32
    return %arg0, %c0_i32, %arg1 : i32, i32, i32
  }
  func.func @transform_2(%arg0: i32, %arg1: i32) -> (i32, i32, i32) {
    %c0_i32 = arith.constant 0 : i32
    %c0_i32_0 = arith.constant 0 : i32
    return %arg0, %c0_i32, %arg1 : i32, i32, i32
  }
}

</mosaic_0001>

<llo_original>
// kernel: inv_conv1x1_lu_forward.1
$region0: #{inv_conv1x1_lu_forward.1}
  #allocation0 [shape = 'u32[]', space=smem, size = 0x4, offset = 0x4, fixed_abs, tag = 'smem constant byte address 0x4 - core index']
  #allocation1 [shape = 'u32[144,128]{1,0:T(1,128)}', space=vmem, size = 0x12000, scoped, tag = 'internal scratch']
  %s0 = inlined_call_operand.vmem [shape: f32[4,4], index: 0, kind: input, shape index: {}]
  %s1 = inlined_call_operand.vmem [shape: f32[2,4,256], index: 1, kind: input, shape index: {}]
  %s2 = inlined_call_operand.vmem [shape: f32[2,4,256], index: 2, kind: output, shape index: {}]
  %s3 = sld [smem:[#allocation0]]
  $region41: #{inv_conv1x1_lu_forward.1} parent=0
    _
  %s5 = ssub.s32 1, %s3
  %s6 = scalar_select 0, %s5, %s3
  loop: start=0, step=1, limit=4
  $region2: #{inv_conv1x1_lu_forward.1} parent=0 // loop_pre_header
    _
  $region3: #{inv_conv1x1_lu_forward.1} parent=0 // loop_header
    %s8 = sphi 0, %s12
    %p9 = scmp.ge.s32.totalorder %s8, 4
    %s15 = sphi 0, %s27
    %s16 = sphi 0, %s23
    %s17 = sphi 0, %s15
    %s18 = sphi 0, %s16
    %s19 = sphi 0, %s17
    %s20 = sphi 0, %s18
    %s28 = sphi 0, %s28
    %s30 = sphi 0, %s28
    %s31 = sphi 0, %s30
    %s45 = sphi 0, %s31
    %s53 = sphi 0, %s55
    %s56 = sphi 0, %s53
    %s57 = sphi 0, %s56
    %s73 = sphi 0, %s57
    %s81 = sphi 0, %s83
    %s84 = sphi 0, %s81
    %s85 = sphi 0, %s84
    %s101 = sphi 0, %s85
  $region4: #{inv_conv1x1_lu_forward.1} parent=0 // loop_header_branch
    %11 = sbr.rel (%p9) target = $region8
  $region5: #{inv_conv1x1_lu_forward.1} parent=0 // loop_body
    %s13 = ssub.s32 %s8, 1
    %s14 = ssub.s32 %s8, 2
    %s21 = sadd.s32 1, %s16
    %p22 = scmp.ge.s32.totalorder %s21, 1
    %s23 = scalar_select %p22, 0, %s21
    %s24 = sadd.s32 1, %s15
    %s25 = scalar_select %p22, %s24, %s15
    %p26 = scmp.ge.s32.totalorder %s25, 2
    %s27 = scalar_select %p26, 0, %s25
    %s29 = sadd.s32 %s28, 1
    %p32 = scmp.eq.s32.totalorder %s8, 1
    %p33 = scmp.ne.s32.totalorder %s28, %s30
    %p34 = scmp.eq.s32.totalorder %s8, 0
    %p35 = por %p33, %p34
    %p36 = scmp.ne.s32.totalorder %s28, %s30
    %p37 = scmp.eq.s32.totalorder %s13, 1
    %p38 = por %p36, %p37
    %p39 = scmp.ne.s32.totalorder %s30, %s31
    %p40 = scmp.eq.s32.totalorder %s13, 0
    %p41 = por %p39, %p40
    %p42 = scmp.ne.s32.totalorder %s30, %s31
    %p43 = scmp.eq.s32.totalorder %s14, 1
    %p44 = por %p42, %p43
    %p46 = scmp.ne.s32.totalorder %s31, %s45
    %p47 = scmp.eq.s32.totalorder %s14, 0
    %p48 = por %p46, %p47
    %s49 = ssub.s32 %s15, %s27
    %s50 = ssub.s32 %s16, %s23
    %s51 = sor.u32 %s49, %s50
    %p52 = scmp.eq.s32.totalorder %s51, 0
    %s54 = sadd.s32 %s53, 1
    %s55 = scalar_select %p52, %s53, %s54
    %p58 = pneg %p52
    %p59 = scmp.eq.s32.totalorder %s8, 1
    %p60 = por %p58, %p59
    %p61 = scmp.ne.s32.totalorder %s53, %s56
    %p62 = scmp.eq.s32.totalorder %s8, 0
    %p63 = por %p61, %p62
    %p64 = scmp.ne.s32.totalorder %s53, %s56
    %p65 = scmp.eq.s32.totalorder %s13, 1
    %p66 = por %p64, %p65
    %p67 = scmp.ne.s32.totalorder %s56, %s57
    %p68 = scmp.eq.s32.totalorder %s13, 0
    %p69 = por %p67, %p68
    %p70 = scmp.ne.s32.totalorder %s56, %s57
    %p71 = scmp.eq.s32.totalorder %s14, 1
    %p72 = por %p70, %p71
    %p74 = scmp.ne.s32.totalorder %s57, %s73
    %p75 = scmp.eq.s32.totalorder %s14, 0
    %p76 = por %p74, %p75
    %s77 = ssub.s32 %s15, %s27
    %s78 = ssub.s32 %s16, %s23
    %s79 = sor.u32 %s77, %s78
    %p80 = scmp.eq.s32.totalorder %s79, 0
    %s82 = sadd.s32 %s81, 1
    %s83 = scalar_select %p80, %s81, %s82
    %p86 = pneg %p80
    %p87 = scmp.eq.s32.totalorder %s8, 1
    %p88 = por %p86, %p87
    %p89 = scmp.ne.s32.totalorder %s81, %s84
    %p90 = scmp.eq.s32.totalorder %s8, 0
    %p91 = por %p89, %p90
    %p92 = scmp.ne.s32.totalorder %s81, %s84
    %p93 = scmp.eq.s32.totalorder %s13, 1
    %p94 = por %p92, %p93
    %p95 = scmp.ne.s32.totalorder %s84, %s85
    %p96 = scmp.eq.s32.totalorder %s13, 0
    %p97 = por %p95, %p96
    %p98 = scmp.ne.s32.totalorder %s84, %s85
    %p99 = scmp.eq.s32.totalorder %s14, 1
    %p100 = por %p98, %p99
    %p102 = scmp.ne.s32.totalorder %s85, %s101
    %p103 = scmp.eq.s32.totalorder %s14, 0
    %p104 = por %p102, %p103
    %p105 = scmp.le.s32.totalorder 1, %s8
    %p106 = scmp.lt.s32.totalorder %s8, 3
    %p107 = pnand %p105, %p106
    %p108 = pneg %p107
    // Predicated region
    $region9: #{inv_conv1x1_lu_forward.1} parent=5 // pred_check
      _
    $region10: #{inv_conv1x1_lu_forward.1} parent=5 // pred_check_branch
      %110 = sbr.rel (%p107) target = $region12
    $region11: #{inv_conv1x1_lu_forward.1} parent=5 // pred_region
      %s111 = ssub.s32 %s8, 1
      // Predicated region
      $region13: #{inv_conv1x1_lu_forward.1} parent=11 // pred_check
        %p112 = pneg %p41
      $region14: #{inv_conv1x1_lu_forward.1} parent=11 // pred_check_branch
        %114 = sbr.rel (%p112) target = $region16
      $region15: #{inv_conv1x1_lu_forward.1} parent=11 // pred_region
        _
      $region16: #{inv_conv1x1_lu_forward.1} parent=11 // pred_fallthru
        _
    $region12: #{inv_conv1x1_lu_forward.1} parent=5 // pred_fallthru
      _
    %p115 = scmp.lt.s32.totalorder %s8, 2
    // Predicated region
    $region17: #{inv_conv1x1_lu_forward.1} parent=5 // pred_check
      %p116 = pneg %p115
    $region18: #{inv_conv1x1_lu_forward.1} parent=5 // pred_check_branch
      %118 = sbr.rel (%p116) target = $region20
    $region19: #{inv_conv1x1_lu_forward.1} parent=5 // pred_region
      // Predicated region
      $region21: #{inv_conv1x1_lu_forward.1} parent=19 // pred_check
        %p119 = pneg %p63
      $region22: #{inv_conv1x1_lu_forward.1} parent=19 // pred_check_branch
        %121 = sbr.rel (%p119) target = $region24
      $region23: #{inv_conv1x1_lu_forward.1} parent=19 // pred_region
        %s122 = smul.u32 2, %s16
        %p123 = scmp.lt.s32.totalorder %s15, 1
        %s124 = scalar_select %p123, %s15, 1
        %p125 = scmp.lt.s32.totalorder %s122, 1
        %s126 = scalar_select %p125, %s122, 1
        %s127 = smul.addr %s124, 2
        %s128 = sadd.s32 %s126, %s127
        %s129 = smul.addr %s128, 4
        %s130 = scalar_lea.vmem %s1, %s129
        %s131 = smul.u32 2, %s16
      $region24: #{inv_conv1x1_lu_forward.1} parent=19 // pred_fallthru
        _
    $region20: #{inv_conv1x1_lu_forward.1} parent=5 // pred_fallthru
      _
    %p132 = scmp.le.s32.totalorder 1, %s8
    %p133 = scmp.lt.s32.totalorder %s8, 3
    %p134 = pnand %p132, %p133
    %p135 = pneg %p134
    // Predicated region
    $region25: #{inv_conv1x1_lu_forward.1} parent=5 // pred_check
      _
    $region26: #{inv_conv1x1_lu_forward.1} parent=5 // pred_check_branch
      %137 = sbr.rel (%p134) target = $region28
    $region27: #{inv_conv1x1_lu_forward.1} parent=5 // pred_region
      %s138 = ssub.s32 %s8, 1
      %p139 = pneg %p41
      %p140 = pneg %p38
      %s141 = smul.u32 2, %s18
      %p142 = scmp.lt.s32.totalorder %s17, 1
      %s143 = scalar_select %p142, %s17, 1
      %p144 = scmp.lt.s32.totalorder %s141, 1
      %s145 = scalar_select %p144, %s141, 1
      %s146 = smul.addr %s143, 2
      %s147 = sadd.s32 %s145, %s146
      %s148 = smul.addr %s147, 4
      %s149 = scalar_lea.vmem %s1, %s148
      %p150 = pneg %p69
      %p151 = pneg %p66
      %p152 = pneg %p97
      %p153 = pneg %p94
      %s154 = smul.u32 2, %s18
      %p155 = scmp.lt.s32.totalorder %s17, 1
      %s156 = scalar_select %p155, %s17, 1
      %p157 = scmp.lt.s32.totalorder %s154, 1
      %s158 = scalar_select %p157, %s154, 1
      %s159 = smul.addr %s156, 2
      %s160 = sadd.s32 %s158, %s159
      %s161 = smul.addr %s160, 4
      %s162 = scalar_lea.vmem %s2, %s161
      %s163 = smul.u32 2, %s18
      %p164 = scmp.lt.s32.totalorder %s17, 1
      %s165 = scalar_select %p164, %s17, 1
      %p166 = scmp.lt.s32.totalorder %s163, 1
      %s167 = scalar_select %p166, %s163, 1
      %s168 = smul.addr %s165, 2
      %s169 = sadd.s32 %s167, %s168
      %s170 = smul.addr %s169, 4
      %s171 = scalar_lea.vmem %s1, %s170
      %s172 = smul.u32 2, %s18
      %s173 = smul.u32 2, %s18
      %p174 = scmp.lt.s32.totalorder %s17, 1
      %s175 = scalar_select %p174, %s17, 1
      %p176 = scmp.lt.s32.totalorder %s173, 1
      %s177 = scalar_select %p176, %s173, 1
      %s178 = smul.addr %s175, 2
      %s179 = sadd.s32 %s177, %s178
      %s180 = smul.addr %s179, 4
      %s181 = scalar_lea.vmem %s2, %s180
      %s182 = smul.u32 2, %s18
      %v183 = vld [vmem:[%s0] sm:$0xf]
      %v184 = vld [vmem:[%s171] sm:$0xff]
      %v186 = vcombine.high %v184, %v184
      %vm187 = vcmask 31744
      %v189 = vsel %vm187, %v183, 0
      %vm191 = vcmask 1043456
      %v192 = vsel %vm191, %v184, 0
      %v194 = vsel %vm191, %v186, 0
      %196 = vmatprep.subr.mxu0 0.0
      %197 = vmatpush1.msra.mxu0 0.0
      %198 = vmatprep.subr.mxu0 0.0
      %199 = vmatpush1.msra.mxu0 0.0
      %200 = vmatprep.subr.mxu0 0.0
      %201 = vmatpush1.msra.mxu0 0.0
      %202 = vmatprep.subr.mxu0 0.0
      %203 = vmatpush1.msra.mxu0 0.0
      %204 = vmatprep.subr.mxu0 0.0
      %205 = vmatpush1.msra.mxu0 0.0
      %206 = vmatprep.subr.mxu0 0.0
      %207 = vmatpush1.msra.mxu0 0.0
      %208 = vmatprep.subr.mxu0 0.0
      %209 = vmatpush1.msra.mxu0 0.0
      %210 = vmatprep.subr.mxu0 0.0
      %211 = vmatpush1.msra.mxu0 0.0
      %212 = vmatprep.subr.mxu0 0.0
      %213 = vmatpush1.msra.mxu0 0.0
      %214 = vmatprep.subr.mxu0 0.0
      %215 = vmatpush1.msra.mxu0 0.0
      %216 = vmatprep.subr.mxu0 0.0
      %217 = vmatpush1.msra.mxu0 0.0
      %218 = vmatprep.subr.mxu0 0.0
      %219 = vmatpush1.msra.mxu0 0.0
      %220 = vmatprep.subr.mxu0 0.0
      %221 = vmatpush1.msra.mxu0 0.0
      %222 = vmatprep.subr.mxu0 0.0
      %223 = vmatpush1.msra.mxu0 0.0
      %224 = vmatprep.subr.mxu0 0.0
      %225 = vmatpush1.msra.mxu0 0.0
      %226 = vmatprep.subr.mxu0 %v194
      %227 = vmatpush1.msra.mxu0 %v192
      %228 = vmatprep.subr.mxu0 0.0
      %229 = vmatpush2.msra.mxu0 0.0
      %230 = vmatprep.subr.mxu0 0.0
      %231 = vmatpush2.msra.mxu0 0.0
      %232 = vmatprep.subr.mxu0 0.0
      %233 = vmatpush2.msra.mxu0 0.0
      %234 = vmatprep.subr.mxu0 0.0
      %235 = vmatpush2.msra.mxu0 0.0
      %236 = vmatprep.subr.mxu0 0.0
      %237 = vmatpush2.msra.mxu0 0.0
      %238 = vmatprep.subr.mxu0 0.0
      %239 = vmatpush2.msra.mxu0 0.0
      %240 = vmatprep.subr.mxu0 0.0
      %241 = vmatpush2.msra.mxu0 0.0
      %242 = vmatprep.subr.mxu0 0.0
      %243 = vmatpush2.msra.mxu0 0.0
      %244 = vmatprep.subr.mxu0 0.0
      %245 = vmatpush2.msra.mxu0 0.0
      %246 = vmatprep.subr.mxu0 0.0
      %247 = vmatpush2.msra.mxu0 0.0
      %248 = vmatprep.subr.mxu0 0.0
      %249 = vmatpush2.msra.mxu0 0.0
      %250 = vmatprep.subr.mxu0 0.0
      %251 = vmatpush2.msra.mxu0 0.0
      %252 = vmatprep.subr.mxu0 0.0
      %253 = vmatpush2.msra.mxu0 0.0
      %254 = vmatprep.subr.mxu0 0.0
      %255 = vmatpush2.msra.mxu0 0.0
      %256 = vmatprep.subr.mxu0 0.0
      %257 = vmatpush2.msra.mxu0 0.0
      %258 = vmatprep.subr.mxu0 0.0
      %259 = vmatpush2.msra.mxu0 0.0
      %260 = vmatprep.mubr.f32.mxu0 0.0
      %261 = vmatmul.mubr.f32.gmra.mxu0 %v189
      %v262 = vpop.f32.mrf.mxu0
      %v263 = vadd.f32 0.0, %v262
      %v264 = vpop.f32.mrf.mxu0
      %v265 = vadd.f32 0.0, %v264
      %266 = vdwg.mxu0
      %v269 = vcombine.low %v263, %v265
      %271 = vst [vmem:[%s181] sm:$0xff] %v269
      %s272 = smul.u32 2, %s18
      %p273 = scmp.lt.s32.totalorder %s17, 1
      %s274 = scalar_select %p273, %s17, 1
      %p275 = scmp.lt.s32.totalorder %s272, 1
      %s276 = scalar_select %p275, %s272, 1
      %s277 = smul.addr %s274, 2
      %s278 = sadd.s32 %s276, %s277
      %s279 = smul.addr %s278, 4
      %s280 = scalar_lea.vmem %s2, %s279
      // Predicated region
      $region29: #{inv_conv1x1_lu_forward.1} parent=27 // pred_check
        %p281 = pneg %p94
      $region30: #{inv_conv1x1_lu_forward.1} parent=27 // pred_check_branch
        %283 = sbr.rel (%p281) target = $region32
      $region31: #{inv_conv1x1_lu_forward.1} parent=27 // pred_region
        %s284 = smul.u32 2, %s18
      $region32: #{inv_conv1x1_lu_forward.1} parent=27 // pred_fallthru
        _
    $region28: #{inv_conv1x1_lu_forward.1} parent=5 // pred_fallthru
      _
    %p285 = scmp.le.s32.totalorder 2, %s8
    // Predicated region
    $region33: #{inv_conv1x1_lu_forward.1} parent=5 // pred_check
      %p286 = pneg %p285
    $region34: #{inv_conv1x1_lu_forward.1} parent=5 // pred_check_branch
      %288 = sbr.rel (%p286) target = $region36
    $region35: #{inv_conv1x1_lu_forward.1} parent=5 // pred_region
      %s289 = ssub.s32 %s8, 2
      // Predicated region
      $region37: #{inv_conv1x1_lu_forward.1} parent=35 // pred_check
        %p290 = pneg %p100
      $region38: #{inv_conv1x1_lu_forward.1} parent=35 // pred_check_branch
        %292 = sbr.rel (%p290) target = $region40
      $region39: #{inv_conv1x1_lu_forward.1} parent=35 // pred_region
        %s293 = smul.u32 2, %s20
        %p294 = scmp.lt.s32.totalorder %s19, 1
        %s295 = scalar_select %p294, %s19, 1
        %p296 = scmp.lt.s32.totalorder %s293, 1
        %s297 = scalar_select %p296, %s293, 1
        %s298 = smul.addr %s295, 2
        %s299 = sadd.s32 %s297, %s298
        %s300 = smul.addr %s299, 4
        %s301 = scalar_lea.vmem %s2, %s300
      $region40: #{inv_conv1x1_lu_forward.1} parent=35 // pred_fallthru
        _
    $region36: #{inv_conv1x1_lu_forward.1} parent=5 // pred_fallthru
      _
  $region6: #{inv_conv1x1_lu_forward.1} parent=0 // loop_footer
    %s12 = sadd.s32 1, %s8
  $region7: #{inv_conv1x1_lu_forward.1} parent=0 // loop_footer_branch
    %7 = sbr.rel target = $region3
  $region8: #{inv_conv1x1_lu_forward.1} parent=0 // loop_exit
    _

</llo_original>
